<compile_context>
chip_gen: v7x
topology: tpu7x:2x2x1
jax: 0.10.0
libtpu: 0.0.40
codegen_flags: <defaults>
</compile_context>

<pallas_src>
import functools

import numpy as np
import jax
import jax.numpy as jnp
from jax import lax
from jax.experimental import pallas as pl
from jax.experimental.pallas import tpu as pltpu


# ----------------------------------------------------------------------------
# Pallas kernel: full FUSE3 forward, batch folded onto the lane axis.
# Layouts inside the kernel (channel-major everywhere, spatial*N on lanes):
#   x      : (C0, N*H*W)
#   x1     : (C1, N*H1*W1)
#   output : (C0, N*H*W)
# ----------------------------------------------------------------------------
def fuse3_kernel(x_ref, x1_ref, w11_ref, b11_ref, w12_ref, b12_ref,
                 rk_ref, w13_ref, b13_ref, mask_ref, o_ref, *, img_w):
    f32 = jnp.float32
    L = x_ref.shape[1]                       # N*H*W (static)

    # --- c11: 1x1 conv (BN folded into weights) + bias + ReLU ---------------
    y11 = jnp.maximum(
        jnp.dot(w11_ref[...], x_ref[...], preferred_element_type=f32)
        + b11_ref[...], 0.0)                                   # (C0, N*H*W)

    # --- c12: 1x1 conv on the low-res branch (channel-major) ----------------
    y12 = jnp.maximum(
        jnp.dot(w12_ref[...], x1_ref[...], preferred_element_type=f32)
        + b12_ref[...], 0.0)                                   # (C0, N*H1*W1)

    # --- bilinear upsample (align_corners=True): ONE kron matmul ------------
    # rk = eye(N) (x) (Ry (x) Rx)^T -> full separable interpolation for every
    # batch element as a single lane-dense matmul (kept in f32 for precision).
    up = jnp.dot(y12, rk_ref[...], preferred_element_type=f32)  # (C0, N*H*W)

    s = up + y11                                               # (C0, N*H*W) f32

    # --- c13: 3x3 conv as ONE im2col matmul ----------------------------------
    # taps built with XLU lane rolls; wrapped / out-of-image lanes are zeroed
    # by the precomputed per-tap 0/1 masks (tiled per batch element).
    taps = []
    for kh in range(3):
        for kw in range(3):
            dy, dx = kh - 1, kw - 1
            off = dy * img_w + dx            # tap[:, p] = s[:, p + off]
            t = s if off == 0 else pltpu.roll(s, (-off) % L, 1)
            if not (dy == 0 and dx == 0):
                t = t * mask_ref[kh * 3 + kw:kh * 3 + kw + 1, :]
            taps.append(t)
    # single f32->bf16 cast of the whole im2col matrix (v5e has no bf16 VPU;
    # an early-bf16 tap build is the next micro-optimization on v6e/v7x).
    m2 = jnp.concatenate(taps, axis=0).astype(jnp.bfloat16)    # (9*C0, N*H*W)
    out = jnp.maximum(
        jnp.dot(w13_ref[...], m2, preferred_element_type=f32)
        + b13_ref[...], 0.0)
    o_ref[...] = out.astype(o_ref.dtype)


# ----------------------------------------------------------------------------
# Wrapper: NCHW in / NCHW out, layout plumbing + pallas_call
# ----------------------------------------------------------------------------
def fuse3_forward(x_nchw, x1_nchw, kparams, Ry, Rx):
    """FUSE3 forward. x: (N,C0,H,W), x1: (N,C1,H1,W1). Returns (out, x1)."""
    (W11, b11, W12, b12, W13, b13) = kparams
    N, C0, H, W = x_nchw.shape
    _, C1, H1, W1 = x1_nchw.shape
    HW, HW1 = H * W, H1 * W1
    bf16 = jnp.bfloat16

    # channel-major activations with the batch folded onto the lane axis
    x_cm = jnp.transpose(x_nchw, (1, 0, 2, 3)).reshape(C0, N * HW).astype(bf16)
    x1_cm = jnp.transpose(x1_nchw, (1, 0, 2, 3)).reshape(C1, N * HW1).astype(bf16)

    # block-diagonal separable-upsample matrix: eye(N) (x) (Ry (x) Rx)^T (f32).
    # TODO(synk): at real mmseg resolutions re-check (H*W x H1*W1) per block
    # against v7x's 64 MiB VMEM and fall back to a two-pass separable upsample
    # if the kron matrix no longer fits.
    rk = np.kron(np.asarray(Ry, np.float32), np.asarray(Rx, np.float32)).T
    rk_blk = jnp.asarray(np.kron(np.eye(N, dtype=np.float32), rk))  # (N*HW1, N*HW)

    # per-tap 0/1 boundary masks for the 3x3 conv, tiled per batch element so
    # the cyclic lane rolls never leak across image/batch boundaries.
    hh = np.repeat(np.arange(H), W)
    ww = np.tile(np.arange(W), H)
    masks = np.empty((9, HW), np.float32)
    for kh in range(3):
        for kw in range(3):
            dy, dx = kh - 1, kw - 1
            valid = ((hh + dy >= 0) & (hh + dy < H) &
                     (ww + dx >= 0) & (ww + dx < W))
            masks[kh * 3 + kw] = valid.astype(np.float32)
    masks = jnp.asarray(np.tile(masks, (1, N)), jnp.float32)   # (9, N*HW)

    vmem = pl.BlockSpec(memory_space=pltpu.MemorySpace.VMEM)
    out_flat = pl.pallas_call(
        functools.partial(fuse3_kernel, img_w=W),
        out_shape=jax.ShapeDtypeStruct((C0, N * HW), jnp.float32),
        in_specs=[vmem] * 10,
        out_specs=vmem,
        compiler_params=pltpu.CompilerParams(
            vmem_limit_bytes=32 * 1024 * 1024),
    )(x_cm, x1_cm, W11.astype(bf16), b11, W12.astype(bf16), b12,
      rk_blk, W13.astype(bf16), b13, masks)

    out = jnp.transpose(out_flat.reshape(C0, N, H, W), (1, 0, 2, 3))
    return out, x1_nchw


# ----------------------------------------------------------------------------
# Glue: bilinear interpolation matrices, synthetic params, BN folding, ref.
# ----------------------------------------------------------------------------
def interp_matrix_1d(out_size, in_size):
    """1-D matrix for F.interpolate(mode='bilinear', align_corners=True)."""
    M = np.zeros((out_size, in_size), np.float32)
    if in_size == 1 or out_size == 1:
        M[:, 0] = 1.0
        return M
    idx = np.arange(out_size)
    src = idx * (in_size - 1) / (out_size - 1)
    i0 = np.clip(np.floor(src).astype(np.int64), 0, in_size - 1)
    i1 = np.minimum(i0 + 1, in_size - 1)
    f = (src - i0).astype(np.float32)
    M[idx, i0] += 1.0 - f
    M[idx, i1] += f
    return M


def fold_bn(gamma, beta, mean, var, eps=1e-5):
    scale = gamma / jnp.sqrt(var + eps)
    return scale, beta - mean * scale


def make_params(key, c0, c1):
    """Synthetic PyTorch-layout parameters (Conv2d OIHW + eval-mode BN)."""
    ks = jax.random.split(key, 6)
    w11 = jax.random.normal(ks[0], (c0, c0, 1, 1), jnp.float32) * 0.2
    w12 = jax.random.normal(ks[1], (c0, c1, 1, 1), jnp.float32) * 0.2
    w13 = jax.random.normal(ks[2], (c0, c0, 3, 3), jnp.float32) * 0.1

    def bn(k):
        kg, kb, km, kv = jax.random.split(k, 4)
        gamma = 1.0 + 0.1 * jax.random.normal(kg, (c0,), jnp.float32)
        beta = 0.1 * jax.random.normal(kb, (c0,), jnp.float32)
        mean = 0.1 * jax.random.normal(km, (c0,), jnp.float32)
        var = 1.0 + 0.1 * jax.random.uniform(kv, (c0,), jnp.float32)
        return (gamma, beta, mean, var)

    return (w11, bn(ks[3]), w12, bn(ks[4]), w13, bn(ks[5]))


def fold_params(tparams):
    """Fold BN scales into conv weights; arrange for the kernel layouts."""
    (w11, bn11, w12, bn12, w13, bn13) = tparams
    s11, b11 = fold_bn(*bn11)
    s12, b12 = fold_bn(*bn12)
    s13, b13 = fold_bn(*bn13)
    C0 = w11.shape[0]
    W11 = w11[:, :, 0, 0] * s11[:, None]                      # (C0, C0)
    W12 = w12[:, :, 0, 0] * s12[:, None]                      # (C0, C1)
    w13s = w13 * s13[:, None, None, None]                     # (C0, C0, 3, 3)
    # im2col weight: rows ordered (kh, kw, ci) to match the kernel's tap order
    W13 = jnp.transpose(w13s, (2, 3, 1, 0)).reshape(9 * C0, C0).T  # (C0, 9*C0)
    return (W11, b11.reshape(C0, 1), W12, b12.reshape(C0, 1),
            W13, b13.reshape(C0, 1))


def reference_forward(x, x1, tparams, Ry, Rx):
    """Plain-JAX NCHW reference matching the PyTorch module (eval mode)."""
    (w11, bn11, w12, bn12, w13, bn13) = tparams

    def cbr(inp, w, bn, pad):
        y = lax.conv_general_dilated(
            inp, w, window_strides=(1, 1),
            padding=[(pad, pad), (pad, pad)],
            dimension_numbers=('NCHW', 'OIHW', 'NCHW'))
        scale, bias = fold_bn(*bn)
        return jax.nn.relu(y * scale.reshape(1, -1, 1, 1)
                           + bias.reshape(1, -1, 1, 1))

    y11 = cbr(x, w11, bn11, 0)
    y12 = cbr(x1, w12, bn12, 0)
    t = jnp.einsum('nchw,ah->ncaw', y12, Ry)     # height interp
    up = jnp.einsum('ncaw,bw->ncab', t, Rx)      # width interp
    return cbr(up + y11, w13, bn13, 1)


if __name__ == "__main__":
    # Small shapes consistent with FUSE3: x = high-res branch, x1 = lower-res /
    # wider-channel branch (in_channels_list = (C0, C1)). NCHW like PyTorch.
    N, C0, C1 = 2, 8, 16
    H, W = 16, 16
    H1, W1 = 8, 8

    key = jax.random.PRNGKey(0)
    kx, kx1, kp = jax.random.split(key, 3)
    x = jax.random.normal(kx, (N, C0, H, W), jnp.float32)
    x1 = jax.random.normal(kx1, (N, C1, H1, W1), jnp.float32)
    tparams = make_params(kp, C0, C1)
    kparams = fold_params(tparams)

    Ry = jnp.asarray(interp_matrix_1d(H, H1))   # (H, H1)
    Rx = jnp.asarray(interp_matrix_1d(W, W1))   # (W, W1)

    out, x1_out = fuse3_forward(x, x1, kparams, Ry, Rx)
    out = jax.block_until_ready(out)

    ref = reference_forward(x, x1, tparams, Ry, Rx)
    np.testing.assert_allclose(np.asarray(out), np.asarray(ref),
                               rtol=2e-2, atol=2e-2)
    assert x1_out.shape == x1.shape

    print("KERNEL_OK")
</pallas_src>

<mosaic_0001>
module attributes {stable_mosaic.version = 11 : i64} {
  func.func @fuse3_kernel(%arg0: memref<8x512xbf16, #tpu.memory_space<vmem>>, %arg1: memref<16x128xbf16, #tpu.memory_space<vmem>>, %arg2: memref<8x8xbf16, #tpu.memory_space<vmem>>, %arg3: memref<8x1xf32, #tpu.memory_space<vmem>>, %arg4: memref<8x16xbf16, #tpu.memory_space<vmem>>, %arg5: memref<8x1xf32, #tpu.memory_space<vmem>>, %arg6: memref<128x512xf32, #tpu.memory_space<vmem>>, %arg7: memref<8x72xbf16, #tpu.memory_space<vmem>>, %arg8: memref<8x1xf32, #tpu.memory_space<vmem>>, %arg9: memref<9x512xf32, #tpu.memory_space<vmem>>, %arg10: memref<8x512xf32, #tpu.memory_space<vmem>>) attributes {dimension_semantics = [], scalar_prefetch = 0 : i64, scratch_operands = 0 : i64, tpu.core_type = #tpu.core_type<tc>} {
    %c0 = arith.constant 0 : index
    %c0_0 = arith.constant 0 : index
    %0 = vector.load %arg2[%c0, %c0_0] : memref<8x8xbf16, #tpu.memory_space<vmem>>, vector<8x8xbf16>
    %c0_1 = arith.constant 0 : index
    %c0_2 = arith.constant 0 : index
    %1 = vector.load %arg0[%c0_1, %c0_2] : memref<8x512xbf16, #tpu.memory_space<vmem>>, vector<8x512xbf16>
    %cst = arith.constant dense<0.000000e+00> : vector<8x512xf32>
    %2 = tpu.matmul %0, %1, %cst {dimension_numbers = #tpu.dot_dimension_numbers<[1], [0], [0], [1], [0, 0, 1, 1], [], []>} : vector<8x8xbf16>, vector<8x512xbf16>, vector<8x512xf32> -> vector<8x512xf32>
    %c0_3 = arith.constant 0 : index
    %c0_4 = arith.constant 0 : index
    %3 = vector.load %arg3[%c0_3, %c0_4] : memref<8x1xf32, #tpu.memory_space<vmem>>, vector<8x1xf32>
    %4 = vector.broadcast %3 : vector<8x1xf32> to vector<8x512xf32>
    %5 = arith.addf %2, %4 : vector<8x512xf32>
    %cst_5 = arith.constant 0.000000e+00 : f32
    %6 = vector.broadcast %cst_5 : f32 to vector<8x512xf32>
    %7 = arith.maximumf %5, %6 : vector<8x512xf32>
    %c0_6 = arith.constant 0 : index
    %c0_7 = arith.constant 0 : index
    %8 = vector.load %arg4[%c0_6, %c0_7] : memref<8x16xbf16, #tpu.memory_space<vmem>>, vector<8x16xbf16>
    %c0_8 = arith.constant 0 : index
    %c0_9 = arith.constant 0 : index
    %9 = vector.load %arg1[%c0_8, %c0_9] : memref<16x128xbf16, #tpu.memory_space<vmem>>, vector<16x128xbf16>
    %cst_10 = arith.constant dense<0.000000e+00> : vector<8x128xf32>
    %10 = tpu.matmul %8, %9, %cst_10 {dimension_numbers = #tpu.dot_dimension_numbers<[1], [0], [0], [1], [0, 0, 1, 1], [], []>} : vector<8x16xbf16>, vector<16x128xbf16>, vector<8x128xf32> -> vector<8x128xf32>
    %c0_11 = arith.constant 0 : index
    %c0_12 = arith.constant 0 : index
    %11 = vector.load %arg5[%c0_11, %c0_12] : memref<8x1xf32, #tpu.memory_space<vmem>>, vector<8x1xf32>
    %12 = vector.broadcast %11 : vector<8x1xf32> to vector<8x128xf32>
    %13 = arith.addf %10, %12 : vector<8x128xf32>
    %cst_13 = arith.constant 0.000000e+00 : f32
    %14 = vector.broadcast %cst_13 : f32 to vector<8x128xf32>
    %15 = arith.maximumf %13, %14 : vector<8x128xf32>
    %c0_14 = arith.constant 0 : index
    %c0_15 = arith.constant 0 : index
    %16 = vector.load %arg6[%c0_14, %c0_15] : memref<128x512xf32, #tpu.memory_space<vmem>>, vector<128x512xf32>
    %cst_16 = arith.constant dense<0.000000e+00> : vector<8x512xf32>
    %17 = tpu.matmul %15, %16, %cst_16 {dimension_numbers = #tpu.dot_dimension_numbers<[1], [0], [0], [1], [0, 0, 1, 1], [], []>} : vector<8x128xf32>, vector<128x512xf32>, vector<8x512xf32> -> vector<8x512xf32>
    %18 = arith.addf %17, %7 : vector<8x512xf32>
    %c17_i32 = arith.constant 17 : i32
    %19 = tpu.dynamic_rotate %18 by %c17_i32 dim 1 : vector<8x512xf32>, i32 -> vector<8x512xf32>
    %c0_17 = arith.constant 0 : index
    %c0_18 = arith.constant 0 : index
    %20 = vector.load %arg9[%c0_17, %c0_18] : memref<9x512xf32, #tpu.memory_space<vmem>>, vector<1x512xf32>
    %21 = vector.broadcast %20 : vector<1x512xf32> to vector<8x512xf32>
    %22 = arith.mulf %19, %21 : vector<8x512xf32>
    %c16_i32 = arith.constant 16 : i32
    %23 = tpu.dynamic_rotate %18 by %c16_i32 dim 1 : vector<8x512xf32>, i32 -> vector<8x512xf32>
    %c1 = arith.constant 1 : index
    %c0_19 = arith.constant 0 : index
    %24 = vector.load %arg9[%c1, %c0_19] : memref<9x512xf32, #tpu.memory_space<vmem>>, vector<1x512xf32>
    %25 = vector.broadcast %24 : vector<1x512xf32> to vector<8x512xf32>
    %26 = arith.mulf %23, %25 : vector<8x512xf32>
    %c15_i32 = arith.constant 15 : i32
    %27 = tpu.dynamic_rotate %18 by %c15_i32 dim 1 : vector<8x512xf32>, i32 -> vector<8x512xf32>
    %c2 = arith.constant 2 : index
    %c0_20 = arith.constant 0 : index
    %28 = vector.load %arg9[%c2, %c0_20] : memref<9x512xf32, #tpu.memory_space<vmem>>, vector<1x512xf32>
    %29 = vector.broadcast %28 : vector<1x512xf32> to vector<8x512xf32>
    %30 = arith.mulf %27, %29 : vector<8x512xf32>
    %c1_i32 = arith.constant 1 : i32
    %31 = tpu.dynamic_rotate %18 by %c1_i32 dim 1 : vector<8x512xf32>, i32 -> vector<8x512xf32>
    %c3 = arith.constant 3 : index
    %c0_21 = arith.constant 0 : index
    %32 = vector.load %arg9[%c3, %c0_21] : memref<9x512xf32, #tpu.memory_space<vmem>>, vector<1x512xf32>
    %33 = vector.broadcast %32 : vector<1x512xf32> to vector<8x512xf32>
    %34 = arith.mulf %31, %33 : vector<8x512xf32>
    %c511_i32 = arith.constant 511 : i32
    %35 = tpu.dynamic_rotate %18 by %c511_i32 dim 1 : vector<8x512xf32>, i32 -> vector<8x512xf32>
    %c5 = arith.constant 5 : index
    %c0_22 = arith.constant 0 : index
    %36 = vector.load %arg9[%c5, %c0_22] : memref<9x512xf32, #tpu.memory_space<vmem>>, vector<1x512xf32>
    %37 = vector.broadcast %36 : vector<1x512xf32> to vector<8x512xf32>
    %38 = arith.mulf %35, %37 : vector<8x512xf32>
    %c497_i32 = arith.constant 497 : i32
    %39 = tpu.dynamic_rotate %18 by %c497_i32 dim 1 : vector<8x512xf32>, i32 -> vector<8x512xf32>
    %c6 = arith.constant 6 : index
    %c0_23 = arith.constant 0 : index
    %40 = vector.load %arg9[%c6, %c0_23] : memref<9x512xf32, #tpu.memory_space<vmem>>, vector<1x512xf32>
    %41 = vector.broadcast %40 : vector<1x512xf32> to vector<8x512xf32>
    %42 = arith.mulf %39, %41 : vector<8x512xf32>
    %c496_i32 = arith.constant 496 : i32
    %43 = tpu.dynamic_rotate %18 by %c496_i32 dim 1 : vector<8x512xf32>, i32 -> vector<8x512xf32>
    %c7 = arith.constant 7 : index
    %c0_24 = arith.constant 0 : index
    %44 = vector.load %arg9[%c7, %c0_24] : memref<9x512xf32, #tpu.memory_space<vmem>>, vector<1x512xf32>
    %45 = vector.broadcast %44 : vector<1x512xf32> to vector<8x512xf32>
    %46 = arith.mulf %43, %45 : vector<8x512xf32>
    %c495_i32 = arith.constant 495 : i32
    %47 = tpu.dynamic_rotate %18 by %c495_i32 dim 1 : vector<8x512xf32>, i32 -> vector<8x512xf32>
    %c8 = arith.constant 8 : index
    %c0_25 = arith.constant 0 : index
    %48 = vector.load %arg9[%c8, %c0_25] : memref<9x512xf32, #tpu.memory_space<vmem>>, vector<1x512xf32>
    %49 = vector.broadcast %48 : vector<1x512xf32> to vector<8x512xf32>
    %50 = arith.mulf %47, %49 : vector<8x512xf32>
    %51 = tpu.concatenate %22, %26, %30, %34, %18, %38, %42, %46, %50 in 0 : vector<8x512xf32>, vector<8x512xf32>, vector<8x512xf32>, vector<8x512xf32>, vector<8x512xf32>, vector<8x512xf32>, vector<8x512xf32>, vector<8x512xf32>, vector<8x512xf32> -> vector<72x512xf32>
    %52 = arith.truncf %51 : vector<72x512xf32> to vector<72x512xbf16>
    %c0_26 = arith.constant 0 : index
    %c0_27 = arith.constant 0 : index
    %53 = vector.load %arg7[%c0_26, %c0_27] : memref<8x72xbf16, #tpu.memory_space<vmem>>, vector<8x72xbf16>
    %cst_28 = arith.constant dense<0.000000e+00> : vector<8x512xf32>
    %54 = tpu.matmul %53, %52, %cst_28 {dimension_numbers = #tpu.dot_dimension_numbers<[1], [0], [0], [1], [0, 0, 1, 1], [], []>} : vector<8x72xbf16>, vector<72x512xbf16>, vector<8x512xf32> -> vector<8x512xf32>
    %c0_29 = arith.constant 0 : index
    %c0_30 = arith.constant 0 : index
    %55 = vector.load %arg8[%c0_29, %c0_30] : memref<8x1xf32, #tpu.memory_space<vmem>>, vector<8x1xf32>
    %56 = vector.broadcast %55 : vector<8x1xf32> to vector<8x512xf32>
    %57 = arith.addf %54, %56 : vector<8x512xf32>
    %cst_31 = arith.constant 0.000000e+00 : f32
    %58 = vector.broadcast %cst_31 : f32 to vector<8x512xf32>
    %59 = arith.maximumf %57, %58 : vector<8x512xf32>
    %c0_32 = arith.constant 0 : index
    %c0_33 = arith.constant 0 : index
    %60 = vector.load %arg10[%c0_32, %c0_33] : memref<8x512xf32, #tpu.memory_space<vmem>>, vector<8x512xf32>
    tpu.vector_store %arg10[%c0_32, %c0_33], %59 {strides = array<i32>} : memref<8x512xf32, #tpu.memory_space<vmem>>, vector<8x512xf32>,
    return
  }
}

</mosaic_0001>

<llo_original>
// kernel: tpu_custom_call.1
$region0: #{tpu_custom_call.1}
  #allocation0 [shape = 'u32[]', space=smem, size = 0x4, offset = 0x4, fixed_abs, tag = 'smem constant byte address 0x4 - core index']
  #allocation1 [shape = 'u32[144,128]{1,0:T(1,128)}', space=vmem, size = 0x12000, scoped, tag = 'internal scratch']
  %s0 = inlined_call_operand.vmem [shape: bf16[8,512], index: 0, kind: input, shape index: {}]
  %s1 = inlined_call_operand.vmem [shape: bf16[16,128], index: 1, kind: input, shape index: {}]
  %s2 = inlined_call_operand.vmem [shape: bf16[8,8], index: 2, kind: input, shape index: {}]
  %s3 = inlined_call_operand.vmem [shape: f32[8,1], index: 3, kind: input, shape index: {}]
  %s4 = inlined_call_operand.vmem [shape: bf16[8,16], index: 4, kind: input, shape index: {}]
  %s5 = inlined_call_operand.vmem [shape: f32[8,1], index: 5, kind: input, shape index: {}]
  %s6 = inlined_call_operand.hbm [shape: f32[128,512], index: 6, kind: input, shape index: {}]
  %s7 = inlined_call_operand.vmem [shape: bf16[8,72], index: 7, kind: input, shape index: {}]
  %s8 = inlined_call_operand.vmem [shape: f32[8,1], index: 8, kind: input, shape index: {}]
  %s9 = inlined_call_operand.hbm [shape: f32[9,512], index: 9, kind: input, shape index: {}]
  %s10 = inlined_call_operand.hbm [shape: f32[8,512], index: 10, kind: output, shape index: {}]
  %s11 = sld [smem:[#allocation0]]
  $region58: #{tpu_custom_call.1} parent=0
    _
  %s13 = ssub.s32 1, %s11
  %s14 = scalar_select 0, %s13, %s11
  $region1: #{tpu_custom_call.1} parent=0
    #allocation2 [shape = 'u8[262144]{0}', space=vmem, size = 0x40000, scoped, tag = 'input window, operand 6, single buffered']
    #allocation3 [shape = 's32[1]{0}', space=sflag, size = 0x4, scoped, tag = 'scoped memory for tpu_custom_call.1']
    #allocation4 [shape = 's32[1]{0}', space=sflag, size = 0x4, scoped, tag = 'scoped memory for tpu_custom_call.1']
    #allocation5 [shape = 'u8[32768]{0}', space=vmem, size = 0x8000, scoped, tag = 'input window, operand 9, single buffered']
    #allocation6 [shape = 's32[1]{0}', space=sflag, size = 0x4, scoped, tag = 'scoped memory for tpu_custom_call.1']
    #allocation7 [shape = 'u8[16384]{0}', space=vmem, size = 0x4000, scoped, tag = 'output window, operand 0, single buffered']
    %15 = vsyncpa [#allocation3], 0
    %16 = vsyncpa [#allocation6], 0
    %17 = vsyncpa [#allocation4], 0
    // Predicated region
    $region2: #{tpu_custom_call.1} parent=1 // pred_check
      _
    $region3: #{tpu_custom_call.1} parent=1 // pred_check_branch
      %19 = sbr.rel (0) target = $region5
    $region4: #{tpu_custom_call.1} parent=1 // pred_region
      _
    $region5: #{tpu_custom_call.1} parent=1 // pred_fallthru
      _
    // Predicated region
    $region6: #{tpu_custom_call.1} parent=1 // pred_check
      _
    $region7: #{tpu_custom_call.1} parent=1 // pred_check_branch
      %21 = sbr.rel (0) target = $region9
    $region8: #{tpu_custom_call.1} parent=1 // pred_region
      _
    $region9: #{tpu_custom_call.1} parent=1 // pred_fallthru
      _
    // Predicated region
    $region10: #{tpu_custom_call.1} parent=1 // pred_check
      _
    $region11: #{tpu_custom_call.1} parent=1 // pred_check_branch
      %23 = sbr.rel (0) target = $region13
    $region12: #{tpu_custom_call.1} parent=1 // pred_region
      _
    $region13: #{tpu_custom_call.1} parent=1 // pred_fallthru
      _
    // Predicated region
    $region14: #{tpu_custom_call.1} parent=1 // pred_check
      _
    $region15: #{tpu_custom_call.1} parent=1 // pred_check_branch
      %25 = sbr.rel (0) target = $region17
    $region16: #{tpu_custom_call.1} parent=1 // pred_region
      _
    $region17: #{tpu_custom_call.1} parent=1 // pred_fallthru
      _
    // Predicated region
    $region18: #{tpu_custom_call.1} parent=1 // pred_check
      _
    $region19: #{tpu_custom_call.1} parent=1 // pred_check_branch
      %27 = sbr.rel (0) target = $region21
    $region20: #{tpu_custom_call.1} parent=1 // pred_region
      _
    $region21: #{tpu_custom_call.1} parent=1 // pred_fallthru
      _
    // Predicated region
    $region22: #{tpu_custom_call.1} parent=1 // pred_check
      _
    $region23: #{tpu_custom_call.1} parent=1 // pred_check_branch
      %29 = sbr.rel (0) target = $region25
    $region24: #{tpu_custom_call.1} parent=1 // pred_region
      _
    $region25: #{tpu_custom_call.1} parent=1 // pred_fallthru
      _
    // Predicated region
    $region26: #{tpu_custom_call.1} parent=1 // pred_check
      _
    $region27: #{tpu_custom_call.1} parent=1 // pred_check_branch
      %31 = sbr.rel (0) target = $region29
    $region28: #{tpu_custom_call.1} parent=1 // pred_region
      %s33 = ssub.s32 8192, 8192
      %34 = vsyncadd [#allocation3], %s33
      %s35 = sshll.u32 [#allocation2], 4
      %s36 = int_to_ptr.vmem [resolvable:$true] %s35
      %41 = dma.hbm_to_vmem [thread:$0]  %s6, 8192, %s36, [#allocation3], 512, 512, 32
    $region29: #{tpu_custom_call.1} parent=1 // pred_fallthru
      _
    // Predicated region
    $region30: #{tpu_custom_call.1} parent=1 // pred_check
      _
    $region31: #{tpu_custom_call.1} parent=1 // pred_check_branch
      %43 = sbr.rel (0) target = $region33
    $region32: #{tpu_custom_call.1} parent=1 // pred_region
      _
    $region33: #{tpu_custom_call.1} parent=1 // pred_fallthru
      _
    // Predicated region
    $region34: #{tpu_custom_call.1} parent=1 // pred_check
      _
    $region35: #{tpu_custom_call.1} parent=1 // pred_check_branch
      %45 = sbr.rel (0) target = $region37
    $region36: #{tpu_custom_call.1} parent=1 // pred_region
      _
    $region37: #{tpu_custom_call.1} parent=1 // pred_fallthru
      _
    // Predicated region
    $region38: #{tpu_custom_call.1} parent=1 // pred_check
      _
    $region39: #{tpu_custom_call.1} parent=1 // pred_check_branch
      %47 = sbr.rel (0) target = $region41
    $region40: #{tpu_custom_call.1} parent=1 // pred_region
      %s49 = ssub.s32 1024, 1024
      %50 = vsyncadd [#allocation6], %s49
      %s51 = sshll.u32 [#allocation5], 4
      %s52 = int_to_ptr.vmem [resolvable:$true] %s51
      %57 = dma.hbm_to_vmem [thread:$0]  %s9, 1024, %s52, [#allocation6], 512, 512, 32
    $region41: #{tpu_custom_call.1} parent=1 // pred_fallthru
      _
    // Predicated region
    $region42: #{tpu_custom_call.1} parent=1 // pred_check
      _
    $region43: #{tpu_custom_call.1} parent=1 // pred_check_branch
      %59 = sbr.rel (0) target = $region45
    $region44: #{tpu_custom_call.1} parent=1 // pred_region
      %60 = dma.done [#allocation3], 8192
    $region45: #{tpu_custom_call.1} parent=1 // pred_fallthru
      _
    // Predicated region
    $region46: #{tpu_custom_call.1} parent=1 // pred_check
      _
    $region47: #{tpu_custom_call.1} parent=1 // pred_check_branch
      %62 = sbr.rel (0) target = $region49
    $region48: #{tpu_custom_call.1} parent=1 // pred_region
      %63 = dma.done [#allocation6], 1024
    $region49: #{tpu_custom_call.1} parent=1 // pred_fallthru
      _
    %v65 = vld [vmem:[%s2] sm:$0xf]
    %v66 = vld [vmem:[%s0] sm:$0xff]
    %v67 = vld [vmem:[%s0 + $0x8] sm:$0xff]
    %v68 = vld [vmem:[%s3] sm:$0xff]
    %70 = vset.pattern.permute.xlu0 0
    %71 = vperm.xlu0 %70, %v68
    %v72 = vpop.permute.xlu0 %71
    %v76 = vunpack.c.l.b16 %v66
    %v77 = vunpack.c.h.b16 %v66
    %v78 = vunpack.c.l.b16 %v67
    %v79 = vunpack.c.h.b16 %v67
    %v80 = vpack.c.b16 %v76, %v76
    %v81 = vpack.c.b16 %v77, %v77
    %v82 = vpack.c.b16 %v78, %v78
    %v83 = vpack.c.b16 %v79, %v79
    %vm84 = vcmask 64512
    %v86 = vsel %vm84, %v65, 0
    %vm88 = vcmask 1043456
    %v90 = vsel %vm88, %v80, 0
    %v93 = vsel %vm88, %v81, 0
    %v96 = vsel %vm88, %v82, 0
    %v99 = vsel %vm88, %v83, 0
    %101 = vmatprep.subr.bf16.mxu0 %v93
    %102 = vmatpush1.bf16.msra.mxu0 %v90
    %103 = vmatprep.subr.bf16.mxu0 0
    %104 = vmatpush1.bf16.msra.mxu0 0
    %105 = vmatprep.subr.bf16.mxu0 0
    %106 = vmatpush1.bf16.msra.mxu0 0
    %107 = vmatprep.subr.bf16.mxu0 0
    %108 = vmatpush1.bf16.msra.mxu0 0
    %109 = vmatprep.subr.bf16.mxu0 0
    %110 = vmatpush1.bf16.msra.mxu0 0
    %111 = vmatprep.subr.bf16.mxu0 0
    %112 = vmatpush1.bf16.msra.mxu0 0
    %113 = vmatprep.subr.bf16.mxu0 0
    %114 = vmatpush1.bf16.msra.mxu0 0
    %115 = vmatprep.subr.bf16.mxu0 0
    %116 = vmatpush1.bf16.msra.mxu0 0
    %117 = vmatprep.subr.bf16.mxu0 0
    %118 = vmatpush1.bf16.msra.mxu0 0
    %119 = vmatprep.subr.bf16.mxu0 0
    %120 = vmatpush1.bf16.msra.mxu0 0
    %121 = vmatprep.subr.bf16.mxu0 0
    %122 = vmatpush1.bf16.msra.mxu0 0
    %123 = vmatprep.subr.bf16.mxu0 0
    %124 = vmatpush1.bf16.msra.mxu0 0
    %125 = vmatprep.subr.bf16.mxu0 0
    %126 = vmatpush1.bf16.msra.mxu0 0
    %127 = vmatprep.subr.bf16.mxu0 0
    %128 = vmatpush1.bf16.msra.mxu0 0
    %129 = vmatprep.subr.bf16.mxu0 0
    %130 = vmatpush1.bf16.msra.mxu0 0
    %131 = vmatprep.subr.bf16.mxu0 0
    %132 = vmatpush1.bf16.msra.mxu0 0
    %133 = vmatprep.mubr.bf16.mxu0 0
    %134 = vmatmul.mubr.bf16.gmra.mrb[0].mxu0 %v86
    %v135 = vpop.f32.mrb[0].mxu0
    %v136 = vadd.f32 %v72, %v135
    %v137 = vpop.f32.mrb[0].mxu0
    %v138 = vadd.f32 %v72, %v137
    %v139 = vpop.f32.mrb[0].mxu0
    %v140 = vpop.f32.mrb[0].mxu0
    %141 = vdwg.mxu0
    %142 = vmatprep.subr.bf16.mxu0 %v99
    %143 = vmatpush1.bf16.msra.mxu0 %v96
    %144 = vmatprep.subr.bf16.mxu0 0
    %145 = vmatpush1.bf16.msra.mxu0 0
    %146 = vmatprep.subr.bf16.mxu0 0
    %147 = vmatpush1.bf16.msra.mxu0 0
    %148 = vmatprep.subr.bf16.mxu0 0
    %149 = vmatpush1.bf16.msra.mxu0 0
    %150 = vmatprep.subr.bf16.mxu0 0
    %151 = vmatpush1.bf16.msra.mxu0 0
    %152 = vmatprep.subr.bf16.mxu0 0
    %153 = vmatpush1.bf16.msra.mxu0 0
    %154 = vmatprep.subr.bf16.mxu0 0
    %155 = vmatpush1.bf16.msra.mxu0 0
    %156 = vmatprep.subr.bf16.mxu0 0
    %157 = vmatpush1.bf16.msra.mxu0 0
    %158 = vmatprep.subr.bf16.mxu0 0
    %159 = vmatpush1.bf16.msra.mxu0 0
    %160 = vmatprep.subr.bf16.mxu0 0
    %161 = vmatpush1.bf16.msra.mxu0 0
    %162 = vmatprep.subr.bf16.mxu0 0
    %163 = vmatpush1.bf16.msra.mxu0 0
    %164 = vmatprep.subr.bf16.mxu0 0
    %165 = vmatpush1.bf16.msra.mxu0 0
    %166 = vmatprep.subr.bf16.mxu0 0
    %167 = vmatpush1.bf16.msra.mxu0 0
    %168 = vmatprep.subr.bf16.mxu0 0
    %169 = vmatpush1.bf16.msra.mxu0 0
    %170 = vmatprep.subr.bf16.mxu0 0
    %171 = vmatpush1.bf16.msra.mxu0 0
    %172 = vmatprep.subr.bf16.mxu0 0
    %173 = vmatpush1.bf16.msra.mxu0 0
    %174 = vmatprep.mubr.bf16.mxu0 0
    %175 = vmatmul.mubr.bf16.gmra.mrb[0].mxu0 %v86
    %v176 = vpop.f32.mrb[0].mxu0
    %v177 = vadd.f32 %v72, %v176
    %v178 = vpop.f32.mrb[0].mxu0
    %v179 = vadd.f32 %v72, %v178
    %v180 = vpop.f32.mrb[0].mxu0
    %v181 = vpop.f32.mrb[0].mxu0
    %182 = vdwg.mxu0
    %v183 = vmax.f32 %v136, 0.0
    %v184 = vmax.f32 %v138, 0.0
    %v185 = vmax.f32 %v177, 0.0
    %v186 = vmax.f32 %v179, 0.0
    %v187 = vld [vmem:[%s4] sm:$0xf]
    %v188 = vld [vmem:[%s1] sm:$0xf]
    %v189 = vld [vmem:[%s1 + $0x4] sm:$0xf]
    %v190 = vld [vmem:[%s5] sm:$0xff]
    %192 = vset.pattern.permute.xlu0 0
    %193 = vperm.xlu0 %192, %v190
    %v194 = vpop.permute.xlu0 %193
    %v198 = vunpack.c.l.b16 %v188
    %v199 = vunpack.c.l.b16 %v189
    %v200 = vpack.c.b16 %v199, %v198
    %vm202 = vcmask 130048
    %v204 = vsel %vm202, %v187, 0
    %206 = vmatprep.subr.bf16.mxu0 0
    %207 = vmatpush1.bf16.msra.mxu0 %v200
    %208 = vmatprep.subr.bf16.mxu0 0
    %209 = vmatpush1.bf16.msra.mxu0 0
    %210 = vmatprep.subr.bf16.mxu0 0
    %211 = vmatpush1.bf16.msra.mxu0 0
    %212 = vmatprep.subr.bf16.mxu0 0
    %213 = vmatpush1.bf16.msra.mxu0 0
    %214 = vmatprep.subr.bf16.mxu0 0
    %215 = vmatpush1.bf16.msra.mxu0 0
    %216 = vmatprep.subr.bf16.mxu0 0
    %217 = vmatpush1.bf16.msra.mxu0 0
    %218 = vmatprep.subr.bf16.mxu0 0
    %219 = vmatpush1.bf16.msra.mxu0 0
    %220 = vmatprep.subr.bf16.mxu0 0
    %221 = vmatpush1.bf16.msra.mxu0 0
    %222 = vmatprep.subr.bf16.mxu0 0
    %223 = vmatpush1.bf16.msra.mxu0 0
    %224 = vmatprep.subr.bf16.mxu0 0
    %225 = vmatpush1.bf16.msra.mxu0 0
    %226 = vmatprep.subr.bf16.mxu0 0
    %227 = vmatpush1.bf16.msra.mxu0 0
    %228 = vmatprep.subr.bf16.mxu0 0
    %229 = vmatpush1.bf16.msra.mxu0 0
    %230 = vmatprep.subr.bf16.mxu0 0
    %231 = vmatpush1.bf16.msra.mxu0 0
    %232 = vmatprep.subr.bf16.mxu0 0
    %233 = vmatpush1.bf16.msra.mxu0 0
    %234 = vmatprep.subr.bf16.mxu0 0
    %235 = vmatpush1.bf16.msra.mxu0 0
    %236 = vmatprep.subr.bf16.mxu0 0
    %237 = vmatpush1.bf16.msra.mxu0 0
    %238 = vmatprep.mubr.bf16.mxu0 0
    %239 = vmatmul.mubr.bf16.gmra.mrb[0].mxu0 %v204
    %v240 = vpop.f32.mrb[0].mxu0
    %v241 = vadd.f32 %v194, %v240
    %v242 = vpop.f32.mrb[0].mxu0
    %v243 = vpop.f32.mrb[0].mxu0
    %v244 = vpop.f32.mrb[0].mxu0
    %245 = vdwg.mxu0
    %v246 = vmax.f32 %v241, 0.0
    %v247 = vld [vmem:[#allocation2] sm:$0xff]
    %v248 = vld [vmem:[#allocation2 + $0x8] sm:$0xff]
    %v249 = vld [vmem:[#allocation2 + $0x10] sm:$0xff]
    %v250 = vld [vmem:[#allocation2 + $0x18] sm:$0xff]
    %v251 = vld [vmem:[#allocation2 + $0x20] sm:$0xff]
    %v252 = vld [vmem:[#allocation2 + $0x28] sm:$0xff]
    %v253 = vld [vmem:[#allocation2 + $0x30] sm:$0xff]
    %v254 = vld [vmem:[#allocation2 + $0x38] sm:$0xff]
    %v255 = vld [vmem:[#allocation2 + $0x40] sm:$0xff]
    %v256 = vld [vmem:[#allocation2 + $0x48] sm:$0xff]
    %v257 = vld [vmem:[#allocation2 + $0x50] sm:$0xff]
    %v258 = vld [vmem:[#allocation2 + $0x58] sm:$0xff]
    %v259 = vld [vmem:[#allocation2 + $0x60] sm:$0xff]
    %v260 = vld [vmem:[#allocation2 + $0x68] sm:$0xff]
    %v261 = vld [vmem:[#allocation2 + $0x70] sm:$0xff]
    %v262 = vld [vmem:[#allocation2 + $0x78] sm:$0xff]
    %v263 = vld [vmem:[#allocation2 + $0x80] sm:$0xff]
    %v264 = vld [vmem:[#allocation2 + $0x88] sm:$0xff]
    %v265 = vld [vmem:[#allocation2 + $0x90] sm:$0xff]
    %v266 = vld [vmem:[#allocation2 + $0x98] sm:$0xff]
    %v267 = vld [vmem:[#allocation2 + $0xa0] sm:$0xff]
    %v268 = vld [vmem:[#allocation2 + $0xa8] sm:$0xff]
    %v269 = vld [vmem:[#allocation2 + $0xb0] sm:$0xff]
    %v270 = vld [vmem:[#allocation2 + $0xb8] sm:$0xff]
    %v271 = vld [vmem:[#allocation2 + $0xc0] sm:$0xff]
    %v272 = vld [vmem:[#allocation2 + $0xc8] sm:$0xff]
    %v273 = vld [vmem:[#allocation2 + $0xd0] sm:$0xff]
    %v274 = vld [vmem:[#allocation2 + $0xd8] sm:$0xff]
    %v275 = vld [vmem:[#allocation2 + $0xe0] sm:$0xff]
    %v276 = vld [vmem:[#allocation2 + $0xe8] sm:$0xff]
    %v277 = vld [vmem:[#allocation2 + $0xf0] sm:$0xff]
    %v278 = vld [vmem:[#allocation2 + $0xf8] sm:$0xff]
    %v279 = vld [vmem:[#allocation2 + $0x100] sm:$0xff]
    %v280 = vld [vmem:[#allocation2 + $0x108] sm:$0xff]
    %v281 = vld [vmem:[#allocation2 + $0x110] sm:$0xff]
    %v282 = vld [vmem:[#allocation2 + $0x118] sm:$0xff]
    %v283 = vld [vmem:[#allocation2 + $0x120] sm:$0xff]
    %v284 = vld [vmem:[#allocation2 + $0x128] sm:$0xff]
    %v285 = vld [vmem:[#allocation2 + $0x130] sm:$0xff]
    %v286 = vld [vmem:[#allocation2 + $0x138] sm:$0xff]
    %v287 = vld [vmem:[#allocation2 + $0x140] sm:$0xff]
    %v288 = vld [vmem:[#allocation2 + $0x148] sm:$0xff]
    %v289 = vld [vmem:[#allocation2 + $0x150] sm:$0xff]
    %v290 = vld [vmem:[#allocation2 + $0x158] sm:$0xff]
    %v291 = vld [vmem:[#allocation2 + $0x160] sm:$0xff]
    %v292 = vld [vmem:[#allocation2 + $0x168] sm:$0xff]
    %v293 = vld [vmem:[#allocation2 + $0x170] sm:$0xff]
    %v294 = vld [vmem:[#allocation2 + $0x178] sm:$0xff]
    %v295 = vld [vmem:[#allocation2 + $0x180] sm:$0xff]
    %v296 = vld [vmem:[#allocation2 + $0x188] sm:$0xff]
    %v297 = vld [vmem:[#allocation2 + $0x190] sm:$0xff]
    %v298 = vld [vmem:[#allocation2 + $0x198] sm:$0xff]
    %v299 = vld [vmem:[#allocation2 + $0x1a0] sm:$0xff]
    %v300 = vld [vmem:[#allocation2 + $0x1a8] sm:$0xff]
    %v301 = vld [vmem:[#allocation2 + $0x1b0] sm:$0xff]
    %v302 = vld [vmem:[#allocation2 + $0x1b8] sm:$0xff]
    %v303 = vld [vmem:[#allocation2 + $0x1c0] sm:$0xff]
    %v304 = vld [vmem:[#allocation2 + $0x1c8] sm:$0xff]
    %v305 = vld [vmem:[#allocation2 + $0x1d0] sm:$0xff]
    %v306 = vld [vmem:[#allocation2 + $0x1d8] sm:$0xff]
    %v307 = vld [vmem:[#allocation2 + $0x1e0] sm:$0xff]
    %v308 = vld [vmem:[#allocation2 + $0x1e8] sm:$0xff]
    %v309 = vld [vmem:[#allocation2 + $0x1f0] sm:$0xff]
    %v310 = vld [vmem:[#allocation2 + $0x1f8] sm:$0xff]
    %311 = vmatprep.subr.mxu0 %v248
    %312 = vmatpush1.msra.mxu0 %v247
    %313 = vmatprep.subr.mxu0 %v252
    %314 = vmatpush1.msra.mxu0 %v251
    %315 = vmatprep.subr.mxu0 %v256
    %316 = vmatpush1.msra.mxu0 %v255
    %317 = vmatprep.subr.mxu0 %v260
    %318 = vmatpush1.msra.mxu0 %v259
    %319 = vmatprep.subr.mxu0 %v264
    %320 = vmatpush1.msra.mxu0 %v263
    %321 = vmatprep.subr.mxu0 %v268
    %322 = vmatpush1.msra.mxu0 %v267
    %323 = vmatprep.subr.mxu0 %v272
    %324 = vmatpush1.msra.mxu0 %v271
    %325 = vmatprep.subr.mxu0 %v276
    %326 = vmatpush1.msra.mxu0 %v275
    %327 = vmatprep.subr.mxu0 %v280
    %328 = vmatpush1.msra.mxu0 %v279
    %329 = vmatprep.subr.mxu0 %v284
    %330 = vmatpush1.msra.mxu0 %v283
    %331 = vmatprep.subr.mxu0 %v288
    %332 = vmatpush1.msra.mxu0 %v287
    %333 = vmatprep.subr.mxu0 %v292
    %334 = vmatpush1.msra.mxu0 %v291
    %335 = vmatprep.subr.mxu0 %v296
    %336 = vmatpush1.msra.mxu0 %v295
    %337 = vmatprep.subr.mxu0 %v300
    %338 = vmatpush1.msra.mxu0 %v299
    %339 = vmatprep.subr.mxu0 %v304
    %340 = vmatpush1.msra.mxu0 %v303
    %341 = vmatprep.subr.mxu0 %v308
    %342 = vmatpush1.msra.mxu0 %v307
    %343 = vmatprep.subr.mxu0 0.0
    %344 = vmatpush1.msra.mxu0 0.0
    %345 = vmatprep.subr.mxu0 0.0
    %346 = vmatpush1.msra.mxu0 0.0
    %347 = vmatprep.subr.mxu0 0.0
    %348 = vmatpush1.msra.mxu0 0.0
    %349 = vmatprep.subr.mxu0 0.0
    %350 = vmatpush1.msra.mxu0 0.0
    %351 = vmatprep.subr.mxu0 0.0
    %352 = vmatpush1.msra.mxu0 0.0
    %353 = vmatprep.subr.mxu0 0.0
    %354 = vmatpush1.msra.mxu0 0.0
    %355 = vmatprep.subr.mxu0 0.0
    %356 = vmatpush1.msra.mxu0 0.0
    %357 = vmatprep.subr.mxu0 0.0
    %358 = vmatpush1.msra.mxu0 0.0
    %359 = vmatprep.subr.mxu0 0.0
    %360 = vmatpush1.msra.mxu0 0.0
    %361 = vmatprep.subr.mxu0 0.0
    %362 = vmatpush1.msra.mxu0 0.0
    %363 = vmatprep.subr.mxu0 0.0
    %364 = vmatpush1.msra.mxu0 0.0
    %365 = vmatprep.subr.mxu0 0.0
    %366 = vmatpush1.msra.mxu0 0.0
    %367 = vmatprep.subr.mxu0 0.0
    %368 = vmatpush1.msra.mxu0 0.0
    %369 = vmatprep.subr.mxu0 0.0
    %370 = vmatpush1.msra.mxu0 0.0
    %371 = vmatprep.subr.mxu0 0.0
    %372 = vmatpush1.msra.mxu0 0.0
    %373 = vmatprep.subr.mxu0 0.0
    %374 = vmatpush1.msra.mxu0 0.0
    %375 = vmatprep.mubr.f32.mxu0 0.0
    %376 = vmatmul.mubr.f32.gmra.mrb[0].mxu0 %v246
    %v377 = vpop.f32.mrb[0].mxu0
    %v378 = vadd.f32 %v183, %v377
    %v379 = vpop.f32.mrb[0].mxu0
    %v380 = vadd.f32 %v184, %v379
    %381 = vdwg.mxu0
    %382 = vmatprep.subr.mxu0 %v250
    %383 = vmatpush1.msra.mxu0 %v249
    %384 = vmatprep.subr.mxu0 %v254
    %385 = vmatpush1.msra.mxu0 %v253
    %386 = vmatprep.subr.mxu0 %v258
    %387 = vmatpush1.msra.mxu0 %v257
    %388 = vmatprep.subr.mxu0 %v262
    %389 = vmatpush1.msra.mxu0 %v261
    %390 = vmatprep.subr.mxu0 %v266
    %391 = vmatpush1.msra.mxu0 %v265
    %392 = vmatprep.subr.mxu0 %v270
    %393 = vmatpush1.msra.mxu0 %v269
    %394 = vmatprep.subr.mxu0 %v274
    %395 = vmatpush1.msra.mxu0 %v273
    %396 = vmatprep.subr.mxu0 %v278
    %397 = vmatpush1.msra.mxu0 %v277
    %398 = vmatprep.subr.mxu0 %v282
    %399 = vmatpush1.msra.mxu0 %v281
    %400 = vmatprep.subr.mxu0 %v286
    %401 = vmatpush1.msra.mxu0 %v285
    %402 = vmatprep.subr.mxu0 %v290
    %403 = vmatpush1.msra.mxu0 %v289
    %404 = vmatprep.subr.mxu0 %v294
    %405 = vmatpush1.msra.mxu0 %v293
    %406 = vmatprep.subr.mxu0 %v298
    %407 = vmatpush1.msra.mxu0 %v297
    %408 = vmatprep.subr.mxu0 %v302
    %409 = vmatpush1.msra.mxu0 %v301
    %410 = vmatprep.subr.mxu0 %v306
    %411 = vmatpush1.msra.mxu0 %v305
    %412 = vmatprep.subr.mxu0 %v310
    %413 = vmatpush1.msra.mxu0 %v309
    %414 = vmatprep.subr.mxu0 0.0
    %415 = vmatpush1.msra.mxu0 0.0
    %416 = vmatprep.subr.mxu0 0.0
    %417 = vmatpush1.msra.mxu0 0.0
    %418 = vmatprep.subr.mxu0 0.0
    %419 = vmatpush1.msra.mxu0 0.0
    %420 = vmatprep.subr.mxu0 0.0
    %421 = vmatpush1.msra.mxu0 0.0
    %422 = vmatprep.subr.mxu0 0.0
    %423 = vmatpush1.msra.mxu0 0.0
    %424 = vmatprep.subr.mxu0 0.0
    %425 = vmatpush1.msra.mxu0 0.0
    %426 = vmatprep.subr.mxu0 0.0
    %427 = vmatpush1.msra.mxu0 0.0
    %428 = vmatprep.subr.mxu0 0.0
    %429 = vmatpush1.msra.mxu0 0.0
    %430 = vmatprep.subr.mxu0 0.0
    %431 = vmatpush1.msra.mxu0 0.0
    %432 = vmatprep.subr.mxu0 0.0
    %433 = vmatpush1.msra.mxu0 0.0
    %434 = vmatprep.subr.mxu0 0.0
    %435 = vmatpush1.msra.mxu0 0.0
    %436 = vmatprep.subr.mxu0 0.0
    %437 = vmatpush1.msra.mxu0 0.0
    %438 = vmatprep.subr.mxu0 0.0
    %439 = vmatpush1.msra.mxu0 0.0
    %440 = vmatprep.subr.mxu0 0.0
    %441 = vmatpush1.msra.mxu0 0.0
    %442 = vmatprep.subr.mxu0 0.0
    %443 = vmatpush1.msra.mxu0 0.0
    %444 = vmatprep.subr.mxu0 0.0
    %445 = vmatpush1.msra.mxu0 0.0
    %446 = vmatprep.mubr.f32.mxu0 0.0
    %447 = vmatmul.mubr.f32.gmra.mrb[0].mxu0 %v246
    %v448 = vpop.f32.mrb[0].mxu0
    %v449 = vadd.f32 %v185, %v448
    %v450 = vpop.f32.mrb[0].mxu0
    %v451 = vadd.f32 %v186, %v450
    %452 = vdwg.mxu0
    %453 = vrot.lane.b32.xlu0 %v378, 17
    %v454 = vpop.permute.xlu0 %453
    %455 = vrot.lane.b32.xlu0 %v380, 17
    %v456 = vpop.permute.xlu0 %455
    %457 = vrot.lane.b32.xlu0 %v449, 17
    %v458 = vpop.permute.xlu0 %457
    %459 = vrot.lane.b32.xlu0 %v451, 17
    %v460 = vpop.permute.xlu0 %459
    %v461 = vlaneseq
    %v462 = vand.u32 %v461, 127
    %vm463 = vcmp.lt.s32.totalorder %v462, 17
    %v464 = vsel %vm463, %v458, %v460
    %v465 = vsel %vm463, %v456, %v458
    %v466 = vsel %vm463, %v454, %v456
    %v467 = vsel %vm463, %v460, %v454
    %v468 = vld [vmem:[#allocation5] ss:$8 sm:$0xf]
    %v470 = vlaneseq
    %v471 = vshrl.u32 %v470, 7
    %v472 = vsub.s32 0, %v471
    %v473 = vrot.slane %v468, %v472
    %v474 = vlaneseq
    %v475 = vshrl.u32 %v474, 7
    %v476 = vsub.s32 1, %v475
    %v477 = vrot.slane %v468, %v476
    %v478 = vlaneseq
    %v479 = vshrl.u32 %v478, 7
    %v480 = vsub.s32 2, %v479
    %v481 = vrot.slane %v468, %v480
    %v482 = vlaneseq
    %v483 = vshrl.u32 %v482, 7
    %v484 = vsub.s32 3, %v483
    %v485 = vrot.slane %v468, %v484
    %v490 = vmul.f32 %v467, %v473
    %v491 = vmul.f32 %v466, %v477
    %v492 = vmul.f32 %v465, %v481
    %v493 = vmul.f32 %v464, %v485
    %494 = vrot.lane.b32.xlu0 %v378, 16
    %v495 = vpop.permute.xlu0 %494
    %496 = vrot.lane.b32.xlu0 %v380, 16
    %v497 = vpop.permute.xlu0 %496
    %498 = vrot.lane.b32.xlu0 %v449, 16
    %v499 = vpop.permute.xlu0 %498
    %500 = vrot.lane.b32.xlu0 %v451, 16
    %v501 = vpop.permute.xlu0 %500
    %vm502 = vcmp.lt.s32.totalorder %v462, 16
    %v503 = vsel %vm502, %v499, %v501
    %v504 = vsel %vm502, %v497, %v499
    %v505 = vsel %vm502, %v495, %v497
    %v506 = vsel %vm502, %v501, %v495
    %s507 = scalar_lea.vmem [#allocation5], 1
    %v508 = vld [vmem:[%s507] ss:$8 sm:$0xf]
    %v510 = vlaneseq
    %v511 = vshrl.u32 %v510, 7
    %v512 = vsub.s32 0, %v511
    %v513 = vrot.slane %v508, %v512
    %v514 = vlaneseq
    %v515 = vshrl.u32 %v514, 7
    %v516 = vsub.s32 1, %v515
    %v517 = vrot.slane %v508, %v516
    %v518 = vlaneseq
    %v519 = vshrl.u32 %v518, 7
    %v520 = vsub.s32 2, %v519
    %v521 = vrot.slane %v508, %v520
    %v522 = vlaneseq
    %v523 = vshrl.u32 %v522, 7
    %v524 = vsub.s32 3, %v523
    %v525 = vrot.slane %v508, %v524
    %v530 = vmul.f32 %v506, %v513
    %v531 = vmul.f32 %v505, %v517
    %v532 = vmul.f32 %v504, %v521
    %v533 = vmul.f32 %v503, %v525
    %534 = vrot.lane.b32.xlu0 %v378, 15
    %v535 = vpop.permute.xlu0 %534
    %536 = vrot.lane.b32.xlu0 %v380, 15
    %v537 = vpop.permute.xlu0 %536
    %538 = vrot.lane.b32.xlu0 %v449, 15
    %v539 = vpop.permute.xlu0 %538
    %540 = vrot.lane.b32.xlu0 %v451, 15
    %v541 = vpop.permute.xlu0 %540
    %vm542 = vcmp.lt.s32.totalorder %v462, 15
    %v543 = vsel %vm542, %v539, %v541
    %v544 = vsel %vm542, %v537, %v539
    %v545 = vsel %vm542, %v535, %v537
    %v546 = vsel %vm542, %v541, %v535
    %s547 = scalar_lea.vmem [#allocation5], 2
    %v548 = vld [vmem:[%s547] ss:$8 sm:$0xf]
    %v550 = vlaneseq
    %v551 = vshrl.u32 %v550, 7
    %v552 = vsub.s32 0, %v551
    %v553 = vrot.slane %v548, %v552
    %v554 = vlaneseq
    %v555 = vshrl.u32 %v554, 7
    %v556 = vsub.s32 1, %v555
    %v557 = vrot.slane %v548, %v556
    %v558 = vlaneseq
    %v559 = vshrl.u32 %v558, 7
    %v560 = vsub.s32 2, %v559
    %v561 = vrot.slane %v548, %v560
    %v562 = vlaneseq
    %v563 = vshrl.u32 %v562, 7
    %v564 = vsub.s32 3, %v563
    %v565 = vrot.slane %v548, %v564
    %v570 = vmul.f32 %v546, %v553
    %v571 = vmul.f32 %v545, %v557
    %v572 = vmul.f32 %v544, %v561
    %v573 = vmul.f32 %v543, %v565
    %574 = vrot.lane.b32.xlu0 %v378, 1
    %v575 = vpop.permute.xlu0 %574
    %576 = vrot.lane.b32.xlu0 %v380, 1
    %v577 = vpop.permute.xlu0 %576
    %578 = vrot.lane.b32.xlu0 %v449, 1
    %v579 = vpop.permute.xlu0 %578
    %580 = vrot.lane.b32.xlu0 %v451, 1
    %v581 = vpop.permute.xlu0 %580
    %vm582 = vcmp.lt.s32.totalorder %v462, 1
    %v583 = vsel %vm582, %v579, %v581
    %v584 = vsel %vm582, %v577, %v579
    %v585 = vsel %vm582, %v575, %v577
    %v586 = vsel %vm582, %v581, %v575
    %s587 = scalar_lea.vmem [#allocation5], 3
    %v588 = vld [vmem:[%s587] ss:$8 sm:$0xf]
    %v590 = vlaneseq
    %v591 = vshrl.u32 %v590, 7
    %v592 = vsub.s32 0, %v591
    %v593 = vrot.slane %v588, %v592
    %v594 = vlaneseq
    %v595 = vshrl.u32 %v594, 7
    %v596 = vsub.s32 1, %v595
    %v597 = vrot.slane %v588, %v596
    %v598 = vlaneseq
    %v599 = vshrl.u32 %v598, 7
    %v600 = vsub.s32 2, %v599
    %v601 = vrot.slane %v588, %v600
    %v602 = vlaneseq
    %v603 = vshrl.u32 %v602, 7
    %v604 = vsub.s32 3, %v603
    %v605 = vrot.slane %v588, %v604
    %v610 = vmul.f32 %v586, %v593
    %v611 = vmul.f32 %v585, %v597
    %v612 = vmul.f32 %v584, %v601
    %v613 = vmul.f32 %v583, %v605
    %614 = vrot.lane.b32.xlu0 %v378, 127
    %v615 = vpop.permute.xlu0 %614
    %616 = vrot.lane.b32.xlu0 %v380, 127
    %v617 = vpop.permute.xlu0 %616
    %618 = vrot.lane.b32.xlu0 %v449, 127
    %v619 = vpop.permute.xlu0 %618
    %620 = vrot.lane.b32.xlu0 %v451, 127
    %v621 = vpop.permute.xlu0 %620
    %vm622 = vcmp.lt.s32.totalorder %v462, 127
    %v623 = vsel %vm622, %v619, %v621
    %v624 = vsel %vm622, %v617, %v619
    %v625 = vsel %vm622, %v615, %v617
    %v626 = vsel %vm622, %v621, %v615
    %s627 = scalar_lea.vmem [#allocation5], 5
    %v628 = vld [vmem:[%s627] ss:$8 sm:$0xf]
    %v630 = vlaneseq
    %v631 = vshrl.u32 %v630, 7
    %v632 = vsub.s32 0, %v631
    %v633 = vrot.slane %v628, %v632
    %v634 = vlaneseq
    %v635 = vshrl.u32 %v634, 7
    %v636 = vsub.s32 1, %v635
    %v637 = vrot.slane %v628, %v636
    %v638 = vlaneseq
    %v639 = vshrl.u32 %v638, 7
    %v640 = vsub.s32 2, %v639
    %v641 = vrot.slane %v628, %v640
    %v642 = vlaneseq
    %v643 = vshrl.u32 %v642, 7
    %v644 = vsub.s32 3, %v643
    %v645 = vrot.slane %v628, %v644
    %v650 = vmul.f32 %v625, %v633
    %v651 = vmul.f32 %v624, %v637
    %v652 = vmul.f32 %v623, %v641
    %v653 = vmul.f32 %v626, %v645
    %654 = vrot.lane.b32.xlu0 %v378, 113
    %v655 = vpop.permute.xlu0 %654
    %656 = vrot.lane.b32.xlu0 %v380, 113
    %v657 = vpop.permute.xlu0 %656
    %658 = vrot.lane.b32.xlu0 %v449, 113
    %v659 = vpop.permute.xlu0 %658
    %660 = vrot.lane.b32.xlu0 %v451, 113
    %v661 = vpop.permute.xlu0 %660
    %vm662 = vcmp.lt.s32.totalorder %v462, 113
    %v663 = vsel %vm662, %v659, %v661
    %v664 = vsel %vm662, %v657, %v659
    %v665 = vsel %vm662, %v655, %v657
    %v666 = vsel %vm662, %v661, %v655
    %s667 = scalar_lea.vmem [#allocation5], 6
    %v668 = vld [vmem:[%s667] ss:$8 sm:$0xf]
    %v670 = vlaneseq
    %v671 = vshrl.u32 %v670, 7
    %v672 = vsub.s32 0, %v671
    %v673 = vrot.slane %v668, %v672
    %v674 = vlaneseq
    %v675 = vshrl.u32 %v674, 7
    %v676 = vsub.s32 1, %v675
    %v677 = vrot.slane %v668, %v676
    %v678 = vlaneseq
    %v679 = vshrl.u32 %v678, 7
    %v680 = vsub.s32 2, %v679
    %v681 = vrot.slane %v668, %v680
    %v682 = vlaneseq
    %v683 = vshrl.u32 %v682, 7
    %v684 = vsub.s32 3, %v683
    %v685 = vrot.slane %v668, %v684
    %v690 = vmul.f32 %v665, %v673
    %v691 = vmul.f32 %v664, %v677
    %v692 = vmul.f32 %v663, %v681
    %v693 = vmul.f32 %v666, %v685
    %694 = vrot.lane.b32.xlu0 %v378, 112
    %v695 = vpop.permute.xlu0 %694
    %696 = vrot.lane.b32.xlu0 %v380, 112
    %v697 = vpop.permute.xlu0 %696
    %698 = vrot.lane.b32.xlu0 %v449, 112
    %v699 = vpop.permute.xlu0 %698
    %700 = vrot.lane.b32.xlu0 %v451, 112
    %v701 = vpop.permute.xlu0 %700
    %vm702 = vcmp.lt.s32.totalorder %v462, 112
    %v703 = vsel %vm702, %v699, %v701
    %v704 = vsel %vm702, %v697, %v699
    %v705 = vsel %vm702, %v695, %v697
    %v706 = vsel %vm702, %v701, %v695
    %s707 = scalar_lea.vmem [#allocation5], 7
    %v708 = vld [vmem:[%s707] ss:$8 sm:$0xf]
    %v710 = vlaneseq
    %v711 = vshrl.u32 %v710, 7
    %v712 = vsub.s32 0, %v711
    %v713 = vrot.slane %v708, %v712
    %v714 = vlaneseq
    %v715 = vshrl.u32 %v714, 7
    %v716 = vsub.s32 1, %v715
    %v717 = vrot.slane %v708, %v716
    %v718 = vlaneseq
    %v719 = vshrl.u32 %v718, 7
    %v720 = vsub.s32 2, %v719
    %v721 = vrot.slane %v708, %v720
    %v722 = vlaneseq
    %v723 = vshrl.u32 %v722, 7
    %v724 = vsub.s32 3, %v723
    %v725 = vrot.slane %v708, %v724
    %v730 = vmul.f32 %v705, %v713
    %v731 = vmul.f32 %v704, %v717
    %v732 = vmul.f32 %v703, %v721
    %v733 = vmul.f32 %v706, %v725
    %734 = vrot.lane.b32.xlu0 %v378, 111
    %v735 = vpop.permute.xlu0 %734
    %736 = vrot.lane.b32.xlu0 %v380, 111
    %v737 = vpop.permute.xlu0 %736
    %738 = vrot.lane.b32.xlu0 %v449, 111
    %v739 = vpop.permute.xlu0 %738
    %740 = vrot.lane.b32.xlu0 %v451, 111
    %v741 = vpop.permute.xlu0 %740
    %vm742 = vcmp.lt.s32.totalorder %v462, 111
    %v743 = vsel %vm742, %v739, %v741
    %v744 = vsel %vm742, %v737, %v739
    %v745 = vsel %vm742, %v735, %v737
    %v746 = vsel %vm742, %v741, %v735
    %s747 = scalar_lea.vmem [#allocation5], 32
    %v748 = vld [vmem:[%s747] ss:$8 sm:$0xf]
    %v750 = vlaneseq
    %v751 = vshrl.u32 %v750, 7
    %v752 = vsub.s32 0, %v751
    %v753 = vrot.slane %v748, %v752
    %v754 = vlaneseq
    %v755 = vshrl.u32 %v754, 7
    %v756 = vsub.s32 1, %v755
    %v757 = vrot.slane %v748, %v756
    %v758 = vlaneseq
    %v759 = vshrl.u32 %v758, 7
    %v760 = vsub.s32 2, %v759
    %v761 = vrot.slane %v748, %v760
    %v762 = vlaneseq
    %v763 = vshrl.u32 %v762, 7
    %v764 = vsub.s32 3, %v763
    %v765 = vrot.slane %v748, %v764
    %v770 = vmul.f32 %v745, %v753
    %v771 = vmul.f32 %v744, %v757
    %v772 = vmul.f32 %v743, %v761
    %v773 = vmul.f32 %v746, %v765
    %v774 = vpack.c.bf16 %v530, %v490
    %v775 = vpack.c.bf16 %v531, %v491
    %v776 = vpack.c.bf16 %v532, %v492
    %v777 = vpack.c.bf16 %v533, %v493
    %v778 = vpack.c.bf16 %v610, %v570
    %v779 = vpack.c.bf16 %v611, %v571
    %v780 = vpack.c.bf16 %v612, %v572
    %v781 = vpack.c.bf16 %v613, %v573
    %v782 = vpack.c.bf16 %v650, %v378
    %v783 = vpack.c.bf16 %v651, %v380
    %v784 = vpack.c.bf16 %v652, %v449
    %v785 = vpack.c.bf16 %v653, %v451
    %v786 = vpack.c.bf16 %v730, %v690
    %v787 = vpack.c.bf16 %v731, %v691
    %v788 = vpack.c.bf16 %v732, %v692
    %v789 = vpack.c.bf16 %v733, %v693
    %v790 = vpack.c.bf16 %v770, %v770
    %v791 = vpack.c.bf16 %v771, %v771
    %v792 = vpack.c.bf16 %v772, %v772
    %v793 = vpack.c.bf16 %v773, %v773
    %v794 = vld [vmem:[%s7] sm:$0xf]
    %v795 = vld [vmem:[%s8] sm:$0xff]
    %797 = vset.pattern.permute.xlu0 0
    %798 = vperm.xlu0 %797, %v795
    %v799 = vpop.permute.xlu0 %798
    %vm801 = vcmask 588800
    %v803 = vsel %vm801, %v794, 0
    %v806 = vsel %vm88, %v790, 0
    %v809 = vsel %vm88, %v791, 0
    %v812 = vsel %vm88, %v792, 0
    %v815 = vsel %vm88, %v793, 0
    %817 = vmatprep.subr.bf16.mxu0 %v775
    %818 = vmatpush1.bf16.msra.mxu0 %v774
    %819 = vmatprep.subr.bf16.mxu0 %v779
    %820 = vmatpush1.bf16.msra.mxu0 %v778
    %821 = vmatprep.subr.bf16.mxu0 %v783
    %822 = vmatpush1.bf16.msra.mxu0 %v782
    %823 = vmatprep.subr.bf16.mxu0 %v787
    %824 = vmatpush1.bf16.msra.mxu0 %v786
    %825 = vmatprep.subr.bf16.mxu0 %v809
    %826 = vmatpush1.bf16.msra.mxu0 %v806
    %827 = vmatprep.subr.bf16.mxu0 0
    %828 = vmatpush1.bf16.msra.mxu0 0
    %829 = vmatprep.subr.bf16.mxu0 0
    %830 = vmatpush1.bf16.msra.mxu0 0
    %831 = vmatprep.subr.bf16.mxu0 0
    %832 = vmatpush1.bf16.msra.mxu0 0
    %833 = vmatprep.subr.bf16.mxu0 0
    %834 = vmatpush1.bf16.msra.mxu0 0
    %835 = vmatprep.subr.bf16.mxu0 0
    %836 = vmatpush1.bf16.msra.mxu0 0
    %837 = vmatprep.subr.bf16.mxu0 0
    %838 = vmatpush1.bf16.msra.mxu0 0
    %839 = vmatprep.subr.bf16.mxu0 0
    %840 = vmatpush1.bf16.msra.mxu0 0
    %841 = vmatprep.subr.bf16.mxu0 0
    %842 = vmatpush1.bf16.msra.mxu0 0
    %843 = vmatprep.subr.bf16.mxu0 0
    %844 = vmatpush1.bf16.msra.mxu0 0
    %845 = vmatprep.subr.bf16.mxu0 0
    %846 = vmatpush1.bf16.msra.mxu0 0
    %847 = vmatprep.subr.bf16.mxu0 0
    %848 = vmatpush1.bf16.msra.mxu0 0
    %849 = vmatprep.mubr.bf16.mxu0 0
    %850 = vmatmul.mubr.bf16.gmra.mrb[0].mxu0 %v803
    %v851 = vpop.f32.mrb[0].mxu0
    %v852 = vadd.f32 %v799, %v851
    %v853 = vpop.f32.mrb[0].mxu0
    %v854 = vadd.f32 %v799, %v853
    %v855 = vpop.f32.mrb[0].mxu0
    %v856 = vpop.f32.mrb[0].mxu0
    %857 = vdwg.mxu0
    %858 = vmatprep.subr.bf16.mxu0 %v777
    %859 = vmatpush1.bf16.msra.mxu0 %v776
    %860 = vmatprep.subr.bf16.mxu0 %v781
    %861 = vmatpush1.bf16.msra.mxu0 %v780
    %862 = vmatprep.subr.bf16.mxu0 %v785
    %863 = vmatpush1.bf16.msra.mxu0 %v784
    %864 = vmatprep.subr.bf16.mxu0 %v789
    %865 = vmatpush1.bf16.msra.mxu0 %v788
    %866 = vmatprep.subr.bf16.mxu0 %v815
    %867 = vmatpush1.bf16.msra.mxu0 %v812
    %868 = vmatprep.subr.bf16.mxu0 0
    %869 = vmatpush1.bf16.msra.mxu0 0
    %870 = vmatprep.subr.bf16.mxu0 0
    %871 = vmatpush1.bf16.msra.mxu0 0
    %872 = vmatprep.subr.bf16.mxu0 0
    %873 = vmatpush1.bf16.msra.mxu0 0
    %874 = vmatprep.subr.bf16.mxu0 0
    %875 = vmatpush1.bf16.msra.mxu0 0
    %876 = vmatprep.subr.bf16.mxu0 0
    %877 = vmatpush1.bf16.msra.mxu0 0
    %878 = vmatprep.subr.bf16.mxu0 0
    %879 = vmatpush1.bf16.msra.mxu0 0
    %880 = vmatprep.subr.bf16.mxu0 0
    %881 = vmatpush1.bf16.msra.mxu0 0
    %882 = vmatprep.subr.bf16.mxu0 0
    %883 = vmatpush1.bf16.msra.mxu0 0
    %884 = vmatprep.subr.bf16.mxu0 0
    %885 = vmatpush1.bf16.msra.mxu0 0
    %886 = vmatprep.subr.bf16.mxu0 0
    %887 = vmatpush1.bf16.msra.mxu0 0
    %888 = vmatprep.subr.bf16.mxu0 0
    %889 = vmatpush1.bf16.msra.mxu0 0
    %890 = vmatprep.mubr.bf16.mxu0 0
    %891 = vmatmul.mubr.bf16.gmra.mrb[0].mxu0 %v803
    %v892 = vpop.f32.mrb[0].mxu0
    %v893 = vadd.f32 %v799, %v892
    %v894 = vpop.f32.mrb[0].mxu0
    %v895 = vadd.f32 %v799, %v894
    %v896 = vpop.f32.mrb[0].mxu0
    %v897 = vpop.f32.mrb[0].mxu0
    %898 = vdwg.mxu0
    %v899 = vmax.f32 %v852, 0.0
    %v900 = vmax.f32 %v854, 0.0
    %v901 = vmax.f32 %v893, 0.0
    %v902 = vmax.f32 %v895, 0.0
    %903 = vst [vmem:[#allocation7] sm:$0xff] %v899
    %904 = vst [vmem:[#allocation7 + $0x8] sm:$0xff] %v900
    %905 = vst [vmem:[#allocation7 + $0x10] sm:$0xff] %v901
    %906 = vst [vmem:[#allocation7 + $0x18] sm:$0xff] %v902
    // Predicated region
    $region50: #{tpu_custom_call.1} parent=1 // pred_check
      _
    $region51: #{tpu_custom_call.1} parent=1 // pred_check_branch
      %908 = sbr.rel (0) target = $region53
    $region52: #{tpu_custom_call.1} parent=1 // pred_region
      %s910 = ssub.s32 512, 512
      %911 = vsyncadd [#allocation4], %s910
      %s913 = sshll.u32 [#allocation7], 4
      %s914 = int_to_ptr.vmem [resolvable:$true] %s913
      %916 = dma.vmem_to_hbm [thread:$0]  %s914, 512, %s10, [#allocation4]
    $region53: #{tpu_custom_call.1} parent=1 // pred_fallthru
      _
    // Predicated region
    $region54: #{tpu_custom_call.1} parent=1 // pred_check
      _
    $region55: #{tpu_custom_call.1} parent=1 // pred_check_branch
      %918 = sbr.rel (0) target = $region57
    $region56: #{tpu_custom_call.1} parent=1 // pred_region
      %919 = dma.done [#allocation4], 512
    $region57: #{tpu_custom_call.1} parent=1 // pred_fallthru
      _
    %920 = vsyncpa [#allocation3], 1
    %921 = vsyncpa [#allocation6], 1
    %922 = vsyncpa [#allocation4], 1

</llo_original>
